<compile_context>
chip_gen: v6e
topology: v6e:2x2x1
jax: 0.10.0
libtpu: 0.0.40
codegen_flags: <defaults>
</compile_context>

<pallas_src>
import functools
import numpy as np
import jax
import jax.numpy as jnp
from jax import lax
from jax.experimental import pallas as pl
from jax.experimental.pallas import tpu as pltpu

_LANES = 128


def _round_up(a, b):
    return ((a + b - 1) // b) * b


# ----------------------------------------------------------------------------
# Pallas kernel 1: attention score  score = tanh(sum(x * w_hat, -1))
# (weight normalisation hoisted to the wrapper; tiled & pipelined over rows)
# ----------------------------------------------------------------------------
def _score_kernel(x_ref, w_ref, o_ref):
    rows, lanes = o_ref.shape                      # (tn // 128, 128)
    c = x_ref.shape[-1]
    # Leading-dim split is a layout no-op; cast to f32 inside the kernel so a
    # bf16 x still uses the f32 VPU/EUP path (v5e has no bf16 VPU/EUP).
    x3 = x_ref[...].astype(jnp.float32).reshape(rows, lanes, c)
    s = jnp.sum(x3 * w_ref[...].reshape(1, 1, c), axis=-1)     # (rows, 128)
    o_ref[...] = jnp.tanh(s)


def compute_score(x, weight, *, target_block_bytes=2 << 20):
    N, C = x.shape
    itemsize = x.dtype.itemsize
    w = weight.astype(jnp.float32).reshape(1, C)
    # Hoist the weight normalisation out of the (tiled) kernel.
    w_hat = w * lax.rsqrt(jnp.sum(w * w))

    rows_out = pl.cdiv(N, _LANES)                  # output is (rows_out, 128)

    # Row tile: multiple of 1024 so the lane-dense output block is a fully
    # (8,128)-aligned (tn//128, 128) tile; sized for ~2 MiB input blocks
    # (≈85% of HBM roofline on v6e, still fits default scoped VMEM on v5e).
    tn = (target_block_bytes // (itemsize * C)) // 1024 * 1024
    tn = max(1024, min(65536, tn))
    if N <= tn:
        tn = rows_out * _LANES                     # single (full) block
    grid_n = pl.cdiv(N, tn)                        # ragged last block is fine

    cp = dict(dimension_semantics=("parallel",))   # megacore-shardable on v7x
    # input double-buffer + f32 cast + product intermediate
    est = 2 * tn * C * itemsize + 2 * tn * C * 4 + (1 << 20)
    if est > (24 << 20):                           # only for very large C
        cp["vmem_limit_bytes"] = int(min(est + (8 << 20), 96 << 20))

    out = pl.pallas_call(
        _score_kernel,
        out_shape=jax.ShapeDtypeStruct((rows_out, _LANES), jnp.float32),
        grid=(grid_n,),
        in_specs=[
            pl.BlockSpec((tn, C), lambda i: (i, 0)),
            pl.BlockSpec((1, C), lambda i: (0, 0)),
        ],
        out_specs=pl.BlockSpec((tn // _LANES, _LANES), lambda i: (i, 0)),
        compiler_params=pltpu.CompilerParams(**cp),
    )(x, w_hat)
    return out.reshape(-1)[:N]                     # (N,) float32


# ----------------------------------------------------------------------------
# Pallas kernel 2: batched row gather + scale (double-buffered across steps)
#   out[i] = x[perm[i]] * score[perm[i]] * multiplier
# ----------------------------------------------------------------------------
def _gather_scale_kernel(perm_ref, sp_ref, x_hbm, o_ref, xbuf, sems, *,
                         tk, multiplier):
    j = pl.program_id(0)
    nsteps = pl.num_programs(0)

    def fetch(step, slot):
        base = step * tk
        # Issue all TK row fetches for `step`; they overlap with each other
        # and with the compute/store of the current step.
        for r in range(tk):
            idx = perm_ref[base + r]
            pltpu.make_async_copy(x_hbm.at[pl.ds(idx, 1), :],
                                  xbuf.at[slot, pl.ds(r, 1), :],
                                  sems.at[slot, r]).start()

    # Prime slot 0 on the first step.
    @pl.when(j == 0)
    def _():
        fetch(0, 0)

    # Prefetch next step's rows into the other slot before consuming ours.
    @pl.when(j + 1 < nsteps)
    def _():
        fetch(j + 1, (j + 1) % 2)

    slot = j % 2
    for r in range(tk):
        pltpu.make_async_copy(x_hbm.at[pl.ds(0, 1), :],
                              xbuf.at[slot, pl.ds(r, 1), :],
                              sems.at[slot, r]).wait()

    rows = xbuf[slot].astype(jnp.float32) * sp_ref[...]          # (tk, C)
    if multiplier != 1.0:                          # trace-time skip (default 1)
        rows = rows * multiplier
    o_ref[...] = rows.astype(o_ref.dtype)


def gather_scale(x, score, perm, multiplier, *, tk_max=64):
    N, C = x.shape
    K = int(perm.shape[0])
    if K == 0:
        return jnp.zeros((0, C), x.dtype)
    if K <= tk_max:
        tk, k_pad = K, K
    else:
        tk, k_pad = tk_max, _round_up(K, tk_max)

    perm_i32 = perm.astype(jnp.int32)
    if k_pad != K:
        perm_i32 = jnp.concatenate(
            [perm_i32, jnp.zeros((k_pad - K,), jnp.int32)])
    # Pre-gather score[perm] once in XLA -> pipelined (tk, 1) blocks; no
    # per-row score DMA inside the kernel.
    score_perm = score.astype(jnp.float32)[perm_i32].reshape(k_pad, 1)

    kernel = functools.partial(_gather_scale_kernel, tk=tk,
                               multiplier=float(multiplier))
    grid_spec = pltpu.PrefetchScalarGridSpec(
        num_scalar_prefetch=1,
        grid=(k_pad // tk,),
        in_specs=[
            pl.BlockSpec((tk, 1), lambda j, perm_ref: (j, 0)),   # score[perm]
            pl.BlockSpec(memory_space=pl.ANY),                   # x stays in HBM
        ],
        out_specs=pl.BlockSpec((tk, C), lambda j, perm_ref: (j, 0)),
        scratch_shapes=[
            pltpu.VMEM((2, tk, C), x.dtype),       # double-buffered gather dst
            pltpu.SemaphoreType.DMA((2, tk)),
        ],
    )
    out = pl.pallas_call(
        kernel,
        out_shape=jax.ShapeDtypeStruct((k_pad, C), x.dtype),
        grid_spec=grid_spec,
        # Cross-step carry through the double buffer -> must be "arbitrary".
        compiler_params=pltpu.CompilerParams(
            dimension_semantics=("arbitrary",)),
    )(perm_i32, score_perm, x)
    return out[:K]


# ----------------------------------------------------------------------------
# Glue: topk (per-batch dense sort), Category_pool, filter_adj
# ----------------------------------------------------------------------------
def topk_glue(score, batch_np, ratio):
    """score: device array (N,), batch_np: host numpy int array (N,)."""
    N = batch_np.shape[0]
    batch_size = int(batch_np.max()) + 1
    num_nodes = np.bincount(batch_np, minlength=batch_size)                 # host
    max_num_nodes = int(num_nodes.max())
    cum_num_nodes = np.concatenate([[0], np.cumsum(num_nodes)[:-1]])
    index = np.arange(N) - cum_num_nodes[batch_np] + batch_np * max_num_nodes

    dense = jnp.full((batch_size * max_num_nodes,),
                     jnp.finfo(score.dtype).min, dtype=score.dtype)
    dense = dense.at[jnp.asarray(index)].set(score)
    dense = dense.reshape(batch_size, max_num_nodes)
    perm = jnp.argsort(-dense, axis=-1)                                     # descending
    perm = perm + jnp.asarray(cum_num_nodes).reshape(-1, 1)
    perm_lab = perm.reshape(-1)

    if isinstance(ratio, int):
        k = np.minimum(np.full(batch_size, ratio, dtype=np.int64), num_nodes)
    else:
        k = np.ceil(ratio * num_nodes.astype(np.float64)).astype(np.int64)
    mask = np.concatenate(
        [np.arange(int(k[i])) + i * max_num_nodes for i in range(batch_size)])
    perm_sel = perm_lab[jnp.asarray(mask)]
    return perm_sel, perm_lab, k


def category_pool(perm, perm_lab, tendency, k):
    if tendency is None:
        return perm
    # TODO(synk): Tendency != None path (hard-coded 90-node blocks with
    # data-dependent per-category counts) has no static-shape equivalent here.
    raise NotImplementedError


def filter_adj_np(edge_index, edge_attr, perm, num_nodes):
    mask = -np.ones(num_nodes, dtype=np.int64)
    mask[perm] = np.arange(perm.shape[0], dtype=np.int64)
    row, col = edge_index[0], edge_index[1]
    row, col = mask[row], mask[col]
    keep = (row >= 0) & (col >= 0)
    row, col = row[keep], col[keep]
    if edge_attr is not None:
        edge_attr = edge_attr[keep]
    return np.stack([row, col], axis=0), edge_attr


# ----------------------------------------------------------------------------
# Full forward (equivalent of Category_TopK_Pooling.forward with defaults:
# ratio=0.5, Tendency=None, min_score=None, multiplier=1.0, nonlinearity=tanh)
# ----------------------------------------------------------------------------
def category_topk_pooling_forward(x, edge_index_np, weight, batch_np,
                                  ratio=0.5, tendency=None, multiplier=1.0,
                                  edge_attr=None):
    score = compute_score(x, weight)              # Pallas kernel 1, (N,)

    perm, perm_lab, k = topk_glue(score, batch_np, ratio)
    perm = category_pool(perm, perm_lab, tendency, k)

    x_out = gather_scale(x, score, perm, multiplier)   # Pallas kernel 2, (K, C)

    perm_np = np.asarray(jax.device_get(perm))
    batch_out = batch_np[perm_np]
    edge_index_out, edge_attr_out = filter_adj_np(
        edge_index_np, edge_attr, perm_np, num_nodes=int(score.shape[0]))
    return x_out, edge_index_out, edge_attr_out, batch_out, perm, perm_lab


# ----------------------------------------------------------------------------
if __name__ == "__main__":
    key = jax.random.PRNGKey(0)
    k_x, k_w, k_e0, k_e1 = jax.random.split(key, 4)

    batch_size = 2
    nodes_per_graph = 16
    N = batch_size * nodes_per_graph            # 32 nodes
    C = 8                                       # in_channels
    E_per_graph = 20

    # node features
    x = jax.random.normal(k_x, (N, C), dtype=jnp.float32)

    # weight init matching torch_geometric's `uniform(size, weight)`
    bound = 1.0 / np.sqrt(C)
    weight = jax.random.uniform(k_w, (1, C), dtype=jnp.float32,
                                minval=-bound, maxval=bound)

    # batch vector (host, static graph structure)
    batch_np = np.repeat(np.arange(batch_size), nodes_per_graph).astype(np.int64)

    # edges within each graph (deterministic from PRNGKey(0) splits)
    src = np.asarray(jax.random.randint(k_e0, (batch_size, E_per_graph),
                                        0, nodes_per_graph))
    dst = np.asarray(jax.random.randint(k_e1, (batch_size, E_per_graph),
                                        0, nodes_per_graph))
    offs = (np.arange(batch_size) * nodes_per_graph)[:, None]
    edge_index_np = np.stack([(src + offs).reshape(-1),
                              (dst + offs).reshape(-1)], axis=0).astype(np.int64)

    x_out, ei_out, ea_out, batch_out, perm, perm_lab = \
        category_topk_pooling_forward(x, edge_index_np, weight, batch_np,
                                      ratio=0.5, tendency=None, multiplier=1.0)
    jax.block_until_ready(x_out)

    # ---- correctness check against a pure numpy reference of the hot path ----
    x_np = np.asarray(x)
    w_np = np.asarray(weight)
    score_ref = np.tanh((x_np * w_np).sum(-1) / np.linalg.norm(w_np))
    perm_np = np.asarray(jax.device_get(perm))
    x_ref = x_np[perm_np] * score_ref[perm_np][:, None]
    assert x_out.shape == (perm_np.shape[0], C)
    assert np.allclose(np.asarray(x_out), x_ref, atol=1e-5, rtol=1e-5)
    assert ei_out.shape[0] == 2
    assert batch_out.shape[0] == perm_np.shape[0]

    print("KERNEL_OK")
</pallas_src>

<mosaic_0001>
module attributes {stable_mosaic.version = 11 : i64} {
  func.func @_score_kernel(%arg0: i32, %arg1: memref<128x8xf32, #tpu.memory_space<vmem>>, %arg2: memref<1x8xf32, #tpu.memory_space<vmem>>, %arg3: memref<1x128xf32, #tpu.memory_space<vmem>>) attributes {dimension_semantics = [#tpu.dimension_semantics<parallel>], iteration_bounds = array<i64: 1>, scalar_prefetch = 0 : i64, scratch_operands = 0 : i64, tpu.core_type = #tpu.core_type<tc>, window_params = [{transform_indices = @transform_0, window_bounds = array<i64: 128, 8>}, {pipeline_mode = #tpu.pipeline_mode<synchronous>, transform_indices = @transform_1, window_bounds = array<i64: 1, 8>}, {transform_indices = @transform_2, window_bounds = array<i64: 1, 128>}]} {
    %c0 = arith.constant 0 : index
    %c0_0 = arith.constant 0 : index
    %0 = vector.load %arg1[%c0, %c0_0] : memref<128x8xf32, #tpu.memory_space<vmem>>, vector<128x8xf32>
    %1 = vector.shape_cast %0 : vector<128x8xf32> to vector<1x128x8xf32>
    %c0_1 = arith.constant 0 : index
    %c0_2 = arith.constant 0 : index
    %2 = vector.load %arg2[%c0_1, %c0_2] : memref<1x8xf32, #tpu.memory_space<vmem>>, vector<1x8xf32>
    %3 = vector.shape_cast %2 : vector<1x8xf32> to vector<1x1x8xf32>
    %4 = vector.broadcast %3 : vector<1x1x8xf32> to vector<1x128x8xf32>
    %5 = arith.mulf %1, %4 : vector<1x128x8xf32>
    %cst = arith.constant dense<0.000000e+00> : vector<1x128xf32>
    %6 = vector.multi_reduction <add>, %5, %cst [2] : vector<1x128x8xf32> to vector<1x128xf32>
    %7 = math.tanh %6 : vector<1x128xf32>
    %c0_3 = arith.constant 0 : index
    %c0_4 = arith.constant 0 : index
    %8 = vector.load %arg3[%c0_3, %c0_4] : memref<1x128xf32, #tpu.memory_space<vmem>>, vector<1x128xf32>
    tpu.vector_store %arg3[%c0_3, %c0_4], %7 {strides = array<i32>} : memref<1x128xf32, #tpu.memory_space<vmem>>, vector<1x128xf32>,
    return
  }
  func.func @transform_0(%arg0: i32) -> (i32, i32) {
    %c0_i32 = arith.constant 0 : i32
    %c0_i32_0 = arith.constant 0 : i32
    return %arg0, %c0_i32 : i32, i32
  }
  func.func @transform_1(%arg0: i32) -> (i32, i32) {
    %c0_i32 = arith.constant 0 : i32
    %c0_i32_0 = arith.constant 0 : i32
    %c0_i32_1 = arith.constant 0 : i32
    return %c0_i32, %c0_i32_0 : i32, i32
  }
  func.func @transform_2(%arg0: i32) -> (i32, i32) {
    %c0_i32 = arith.constant 0 : i32
    %c0_i32_0 = arith.constant 0 : i32
    return %arg0, %c0_i32 : i32, i32
  }
}

</mosaic_0001>

<llo_original>
// kernel: tpu_custom_call.1
$region0: #{tpu_custom_call.1}
  #allocation0 [shape = 'u32[]', space=smem, size = 0x4, offset = 0x4, fixed_abs, tag = 'smem constant byte address 0x4 - core index']
  #allocation1 [shape = 'u32[144,128]{1,0:T(1,128)}', space=vmem, size = 0x12000, scoped, tag = 'internal scratch']
  %s0 = inlined_call_operand.vmem [shape: f32[32,8], index: 0, kind: input, shape index: {}]
  %s1 = inlined_call_operand.vmem [shape: f32[1,8], index: 1, kind: input, shape index: {}]
  %s2 = inlined_call_operand.hbm [shape: f32[1,128], index: 2, kind: output, shape index: {}]
  %s3 = sld [smem:[#allocation0]]
  $region18: #{tpu_custom_call.1} parent=0
    _
  %s5 = ssub.s32 1, %s3
  %s6 = scalar_select 0, %s5, %s3
  $region1: #{tpu_custom_call.1} parent=0
    #allocation2 [shape = 'u8[512]{0}', space=vmem, size = 0x400, scoped, tag = 'output window, operand 0, single buffered']
    #allocation3 [shape = 's32[1]{0}', space=sflag, size = 0x4, scoped, tag = 'scoped memory for tpu_custom_call.1']
    %7 = vsyncpa [#allocation3], 0
    // Predicated region
    $region2: #{tpu_custom_call.1} parent=1 // pred_check
      _
    $region3: #{tpu_custom_call.1} parent=1 // pred_check_branch
      %9 = sbr.rel (0) target = $region5
    $region4: #{tpu_custom_call.1} parent=1 // pred_region
      _
    $region5: #{tpu_custom_call.1} parent=1 // pred_fallthru
      _
    // Predicated region
    $region6: #{tpu_custom_call.1} parent=1 // pred_check
      _
    $region7: #{tpu_custom_call.1} parent=1 // pred_check_branch
      %11 = sbr.rel (0) target = $region9
    $region8: #{tpu_custom_call.1} parent=1 // pred_region
      _
    $region9: #{tpu_custom_call.1} parent=1 // pred_fallthru
      _
    %v12 = vld [vmem:[%s0] sm:$0xff]
    %v13 = vld [vmem:[%s0 + $0x8] sm:$0xff]
    %v14 = vld [vmem:[%s0 + $0x10] sm:$0xff]
    %v15 = vld [vmem:[%s0 + $0x18] sm:$0xff]
    %v16 = vld [vmem:[%s0 + $0x20] sm:$0xff]
    %v17 = vld [vmem:[%s0 + $0x28] sm:$0xff]
    %v18 = vld [vmem:[%s0 + $0x30] sm:$0xff]
    %v19 = vld [vmem:[%s0 + $0x38] sm:$0xff]
    %v20 = vld [vmem:[%s0 + $0x40] sm:$0xff]
    %v21 = vld [vmem:[%s0 + $0x48] sm:$0xff]
    %v22 = vld [vmem:[%s0 + $0x50] sm:$0xff]
    %v23 = vld [vmem:[%s0 + $0x58] sm:$0xff]
    %v24 = vld [vmem:[%s0 + $0x60] sm:$0xff]
    %v25 = vld [vmem:[%s0 + $0x68] sm:$0xff]
    %v26 = vld [vmem:[%s0 + $0x70] sm:$0xff]
    %v27 = vld [vmem:[%s0 + $0x78] sm:$0xff]
    %v28 = vld [vmem:[%s1] sm:$0x1]
    %v30 = vlaneseq
    %v31 = vshrl.u32 %v30, 7
    %v32 = vsub.s32 0, %v31
    %v33 = vrot.slane %v28, %v32
    %v35 = vmul.f32 %v12, %v33
    %v36 = vmul.f32 %v13, %v33
    %v37 = vmul.f32 %v14, %v33
    %v38 = vmul.f32 %v15, %v33
    %v39 = vmul.f32 %v16, %v33
    %v40 = vmul.f32 %v17, %v33
    %v41 = vmul.f32 %v18, %v33
    %v42 = vmul.f32 %v19, %v33
    %v43 = vmul.f32 %v20, %v33
    %v44 = vmul.f32 %v21, %v33
    %v45 = vmul.f32 %v22, %v33
    %v46 = vmul.f32 %v23, %v33
    %v47 = vmul.f32 %v24, %v33
    %v48 = vmul.f32 %v25, %v33
    %v49 = vmul.f32 %v26, %v33
    %v50 = vmul.f32 %v27, %v33
    %vm51 = vcmask 64512
    %v52 = vsel %vm51, %v35, 0.0
    %53 = vadd.xlane.f32.xlu0 %v52
    %v54 = vpop.xlane.xlu0 %53
    %v55 = vsel %vm51, %v36, 0.0
    %56 = vadd.xlane.f32.xlu0 %v55
    %v57 = vpop.xlane.xlu0 %56
    %v58 = vsel %vm51, %v37, 0.0
    %59 = vadd.xlane.f32.xlu0 %v58
    %v60 = vpop.xlane.xlu0 %59
    %v61 = vsel %vm51, %v38, 0.0
    %62 = vadd.xlane.f32.xlu0 %v61
    %v63 = vpop.xlane.xlu0 %62
    %v64 = vsel %vm51, %v39, 0.0
    %65 = vadd.xlane.f32.xlu0 %v64
    %v66 = vpop.xlane.xlu0 %65
    %v67 = vsel %vm51, %v40, 0.0
    %68 = vadd.xlane.f32.xlu0 %v67
    %v69 = vpop.xlane.xlu0 %68
    %v70 = vsel %vm51, %v41, 0.0
    %71 = vadd.xlane.f32.xlu0 %v70
    %v72 = vpop.xlane.xlu0 %71
    %v73 = vsel %vm51, %v42, 0.0
    %74 = vadd.xlane.f32.xlu0 %v73
    %v75 = vpop.xlane.xlu0 %74
    %v76 = vsel %vm51, %v43, 0.0
    %77 = vadd.xlane.f32.xlu0 %v76
    %v78 = vpop.xlane.xlu0 %77
    %v79 = vsel %vm51, %v44, 0.0
    %80 = vadd.xlane.f32.xlu0 %v79
    %v81 = vpop.xlane.xlu0 %80
    %v82 = vsel %vm51, %v45, 0.0
    %83 = vadd.xlane.f32.xlu0 %v82
    %v84 = vpop.xlane.xlu0 %83
    %v85 = vsel %vm51, %v46, 0.0
    %86 = vadd.xlane.f32.xlu0 %v85
    %v87 = vpop.xlane.xlu0 %86
    %v88 = vsel %vm51, %v47, 0.0
    %89 = vadd.xlane.f32.xlu0 %v88
    %v90 = vpop.xlane.xlu0 %89
    %v91 = vsel %vm51, %v48, 0.0
    %92 = vadd.xlane.f32.xlu0 %v91
    %v93 = vpop.xlane.xlu0 %92
    %v94 = vsel %vm51, %v49, 0.0
    %95 = vadd.xlane.f32.xlu0 %v94
    %v96 = vpop.xlane.xlu0 %95
    %v97 = vsel %vm51, %v50, 0.0
    %98 = vadd.xlane.f32.xlu0 %v97
    %v99 = vpop.xlane.xlu0 %98
    %v100 = vtanh.pop %v54
    %v101 = vtanh.pop %v57
    %v102 = vtanh.pop %v60
    %v103 = vtanh.pop %v63
    %v104 = vtanh.pop %v66
    %v105 = vtanh.pop %v69
    %v106 = vtanh.pop %v72
    %v107 = vtanh.pop %v75
    %v108 = vtanh.pop %v78
    %v109 = vtanh.pop %v81
    %v110 = vtanh.pop %v84
    %v111 = vtanh.pop %v87
    %v112 = vtanh.pop %v90
    %v113 = vtanh.pop %v93
    %v114 = vtanh.pop %v96
    %v115 = vtanh.pop %v99
    %v132 = vlaneseq
    %v133 = vand.u32 %v132, 127
    %v134 = vlaneseq
    %v135 = vshrl.u32 %v134, 7
    %v136 = vsub.s32 %v133, %v135
    %v137 = vrot.slane %v100, %v136
    %v138 = vadd.s32 %v133, 4294967288
    %v139 = vlaneseq
    %v140 = vshrl.u32 %v139, 7
    %v141 = vsub.s32 %v138, %v140
    %v142 = vrot.slane %v101, %v141
    %vm143 = vcmask 130112
    %v144 = vsel %vm143, %v142, %v137
    %v145 = vadd.s32 %v133, 4294967280
    %v146 = vlaneseq
    %v147 = vshrl.u32 %v146, 7
    %v148 = vsub.s32 %v145, %v147
    %v149 = vrot.slane %v102, %v148
    %vm150 = vcmask 195712
    %v151 = vsel %vm150, %v149, %v144
    %v152 = vadd.s32 %v133, 4294967272
    %v153 = vlaneseq
    %v154 = vshrl.u32 %v153, 7
    %v155 = vsub.s32 %v152, %v154
    %v156 = vrot.slane %v103, %v155
    %vm157 = vcmask 261312
    %v158 = vsel %vm157, %v156, %v151
    %v159 = vadd.s32 %v133, 4294967264
    %v160 = vlaneseq
    %v161 = vshrl.u32 %v160, 7
    %v162 = vsub.s32 %v159, %v161
    %v163 = vrot.slane %v104, %v162
    %vm164 = vcmask 326912
    %v165 = vsel %vm164, %v163, %v158
    %v166 = vadd.s32 %v133, 4294967256
    %v167 = vlaneseq
    %v168 = vshrl.u32 %v167, 7
    %v169 = vsub.s32 %v166, %v168
    %v170 = vrot.slane %v105, %v169
    %vm171 = vcmask 392512
    %v172 = vsel %vm171, %v170, %v165
    %v173 = vadd.s32 %v133, 4294967248
    %v174 = vlaneseq
    %v175 = vshrl.u32 %v174, 7
    %v176 = vsub.s32 %v173, %v175
    %v177 = vrot.slane %v106, %v176
    %vm178 = vcmask 458112
    %v179 = vsel %vm178, %v177, %v172
    %v180 = vadd.s32 %v133, 4294967240
    %v181 = vlaneseq
    %v182 = vshrl.u32 %v181, 7
    %v183 = vsub.s32 %v180, %v182
    %v184 = vrot.slane %v107, %v183
    %vm185 = vcmask 523712
    %v186 = vsel %vm185, %v184, %v179
    %v187 = vadd.s32 %v133, 4294967232
    %v188 = vlaneseq
    %v189 = vshrl.u32 %v188, 7
    %v190 = vsub.s32 %v187, %v189
    %v191 = vrot.slane %v108, %v190
    %vm192 = vcmask 589312
    %v193 = vsel %vm192, %v191, %v186
    %v194 = vadd.s32 %v133, 4294967224
    %v195 = vlaneseq
    %v196 = vshrl.u32 %v195, 7
    %v197 = vsub.s32 %v194, %v196
    %v198 = vrot.slane %v109, %v197
    %vm199 = vcmask 654912
    %v200 = vsel %vm199, %v198, %v193
    %v201 = vadd.s32 %v133, 4294967216
    %v202 = vlaneseq
    %v203 = vshrl.u32 %v202, 7
    %v204 = vsub.s32 %v201, %v203
    %v205 = vrot.slane %v110, %v204
    %vm206 = vcmask 720512
    %v207 = vsel %vm206, %v205, %v200
    %v208 = vadd.s32 %v133, 4294967208
    %v209 = vlaneseq
    %v210 = vshrl.u32 %v209, 7
    %v211 = vsub.s32 %v208, %v210
    %v212 = vrot.slane %v111, %v211
    %vm213 = vcmask 786112
    %v214 = vsel %vm213, %v212, %v207
    %v215 = vadd.s32 %v133, 4294967200
    %v216 = vlaneseq
    %v217 = vshrl.u32 %v216, 7
    %v218 = vsub.s32 %v215, %v217
    %v219 = vrot.slane %v112, %v218
    %vm220 = vcmask 851712
    %v221 = vsel %vm220, %v219, %v214
    %v222 = vadd.s32 %v133, 4294967192
    %v223 = vlaneseq
    %v224 = vshrl.u32 %v223, 7
    %v225 = vsub.s32 %v222, %v224
    %v226 = vrot.slane %v113, %v225
    %vm227 = vcmask 917312
    %v228 = vsel %vm227, %v226, %v221
    %v229 = vadd.s32 %v133, 4294967184
    %v230 = vlaneseq
    %v231 = vshrl.u32 %v230, 7
    %v232 = vsub.s32 %v229, %v231
    %v233 = vrot.slane %v114, %v232
    %vm234 = vcmask 982912
    %v235 = vsel %vm234, %v233, %v228
    %v236 = vadd.s32 %v133, 4294967176
    %v237 = vlaneseq
    %v238 = vshrl.u32 %v237, 7
    %v239 = vsub.s32 %v236, %v238
    %v240 = vrot.slane %v115, %v239
    %vm241 = vcmask 1048512
    %v242 = vsel %vm241, %v240, %v235
    %244 = vst [vmem:[#allocation2] sm:$0x1] %v242
    // Predicated region
    $region10: #{tpu_custom_call.1} parent=1 // pred_check
      _
    $region11: #{tpu_custom_call.1} parent=1 // pred_check_branch
      %246 = sbr.rel (0) target = $region13
    $region12: #{tpu_custom_call.1} parent=1 // pred_region
      %s248 = ssub.s32 16, 16
      %249 = vsyncadd [#allocation3], %s248
      %s251 = sshll.u32 [#allocation2], 4
      %s252 = int_to_ptr.vmem [resolvable:$true] %s251
      %254 = dma.vmem_to_hbm [thread:$0]  %s252, 16, %s2, [#allocation3]
    $region13: #{tpu_custom_call.1} parent=1 // pred_fallthru
      _
    // Predicated region
    $region14: #{tpu_custom_call.1} parent=1 // pred_check
      _
    $region15: #{tpu_custom_call.1} parent=1 // pred_check_branch
      %256 = sbr.rel (0) target = $region17
    $region16: #{tpu_custom_call.1} parent=1 // pred_region
      %257 = dma.done [#allocation3], 16
    $region17: #{tpu_custom_call.1} parent=1 // pred_fallthru
      _
    %258 = vsyncpa [#allocation3], 1

</llo_original>
